<compile_context>
chip_gen: v7x
topology: tpu7x:2x2x1
jax: 0.10.0
libtpu: 0.0.40
codegen_flags: <defaults>
</compile_context>

<pallas_src>
import functools

import jax
import jax.numpy as jnp
from jax import lax
from jax.experimental import pallas as pl
from jax.experimental.pallas import tpu as pltpu


def _ensemble_highway_kernel(
    scalars_ref,     # SMEM (2,)                       [ensemble_bias, classifier2_bias]
    logits_ref,      # VMEM [N, TB, C]  or [N, C, TB]  stacked client logits (native dtype)
    feats_ref,       # VMEM [K, TB, F]  or [K, F, TB]  stacked client features (native dtype)
    new_logit_ref,   # VMEM [TB, C]     or [C, TB]
    params_ref,      # VMEM [3, C]      or [C, 3]      rows/cols: ens_scale, logit_scale, logit_bias
    w2_ref,          # VMEM [1, F]      or [F, 1]      classifier2 weight
    out_ref,         # VMEM [TB, C]     or [C, TB]
    *,
    batch_last: bool,
):
    n_clients = logits_ref.shape[0]
    k_feats = feats_ref.shape[0]
    red_axis = 0 if batch_last else -1
    gate_shape = (1, out_ref.shape[1]) if batch_last else (out_ref.shape[0], 1)

    params = params_ref[...].astype(jnp.float32)
    if batch_last:
        ens_scale = params[:, 0:1]     # [C, 1]
        logit_scale = params[:, 1:2]
        logit_bias = params[:, 2:3]
    else:
        ens_scale = params[0:1, :]     # [1, C]
        logit_scale = params[1:2, :]
        logit_bias = params[2:3, :]
    w2 = w2_ref[...].astype(jnp.float32)
    ens_bias = scalars_ref[0]
    b2 = scalars_ref[1]

    # --- Fused pass over clients: gate + L1 accumulation + weighted logit sum. ---
    # Each client slab is read once; only small accumulators stay live.
    def client_body(n, carry):
        sum_w, acc = carry
        l_n = logits_ref[n].astype(jnp.float32)                       # [TB, C] / [C, TB]
        w_n = jax.nn.sigmoid(
            jnp.sum(l_n * ens_scale, axis=red_axis, keepdims=True) + ens_bias)
        return sum_w + w_n, acc + w_n * l_n

    sum_w, acc = lax.fori_loop(
        0, n_clients, client_body,
        (jnp.zeros(gate_shape, jnp.float32),
         jnp.zeros(out_ref.shape, jnp.float32)),
        unroll=True)

    # L1-normalized weighted sum with normalization folded into one reciprocal-mul:
    # sum_n (w_n/|w|_1) * L_n == (1/|w|_1) * sum_n w_n * L_n.   (abs() dropped:
    # sigmoid >= 0; this coupling must be revisited if the gate activation changes.)
    calib = acc * pl.reciprocal(sum_w, approx=False) * logit_scale + logit_bias

    # --- Fused pass over features: accumulate the classifier2 dot directly. ---
    # (1/8 * sum_k f_k) @ w2 == 1/8 * sum_k (f_k @ w2); no [K,TB,F] or [TB,F] slab.
    def feat_body(k, carry_pre):
        f_k = feats_ref[k].astype(jnp.float32)                        # [TB, F] / [F, TB]
        return carry_pre + jnp.sum(f_k * w2, axis=red_axis, keepdims=True)

    carry_pre = lax.fori_loop(0, k_feats, feat_body,
                              jnp.zeros(gate_shape, jnp.float32), unroll=True)
    carry = jax.nn.sigmoid(carry_pre * jnp.float32(1.0 / 8.0) + b2)

    new_logit = new_logit_ref[...].astype(jnp.float32)
    out_ref[...] = (carry * calib + (1.0 - carry) * new_logit).astype(out_ref.dtype)


def _pick_batch_tile(batch, tile_b, align):
    """Pick a batch tile: aligned, VMEM-safe, and >=4 grid steps when possible
    so the ("parallel",) grid axis can shard across v7x's two TensorCores."""
    if batch <= align:
        return batch
    if batch > tile_b:
        return tile_b
    target = -(-batch // 4)                                  # cdiv(B, 4)
    tb = ((target + align - 1) // align) * align
    tb = min(tb, tile_b)
    return batch if tb >= batch else tb


def ensemble_highway(params, clients_feature, clients_logit, new_logit, *,
                     tile_b=512, batch_last=False, vmem_limit_bytes=None):
    """JAX/Pallas equivalent of Ensemble_highway.forward.

    Default layout: clients_logit [N,B,C], clients_feature [K,B,F], new_logit [B,C],
    output [B,C].  With `batch_last=True` the caller supplies lane-dense B-last
    layouts ([N,C,B], [K,F,B], [C,B]) and gets a [C,B] output -- much higher lane
    utilization / HBM bandwidth for small C and F.  Python lists are also accepted
    (stacked here; pre-stacked native-dtype arrays -- bf16 encouraged -- avoid an
    extra HBM pass).  Per torch semantics, only the first 8 feature tensors are
    used, each with fixed weight 1/8.
    """
    if isinstance(clients_logit, (list, tuple)):
        logits = jnp.stack(list(clients_logit), axis=0)
    else:
        logits = clients_logit
    if isinstance(clients_feature, (list, tuple)):
        feats = jnp.stack(list(clients_feature)[:8], axis=0)   # zip truncates at 8 in torch
    else:
        feats = clients_feature[:8]

    if batch_last:
        n_clients, num_c, batch = logits.shape
        k_feats, feat_dim, batch_f = feats.shape
        assert new_logit.shape == (num_c, batch)
        align = 128                                            # lane axis
    else:
        n_clients, batch, num_c = logits.shape
        k_feats, batch_f, feat_dim = feats.shape
        assert new_logit.shape == (batch, num_c)
        align = 8                                              # sublane axis
    assert batch_f == batch
    assert tile_b % align == 0, f"tile_b must be a multiple of {align}"

    # Parameters: merge the three C-length rows into one resident block; scalars in SMEM.
    es = jnp.asarray(params["ensemble_scale"], jnp.float32).reshape(num_c)
    ls = jnp.asarray(params["logit_scale"], jnp.float32).reshape(num_c)
    lb = jnp.asarray(params["logit_bias"], jnp.float32).reshape(num_c)
    if batch_last:
        params_blk = jnp.stack([es, ls, lb], axis=1)                       # [C, 3]
        w2_blk = jnp.asarray(params["classifier2_w"], jnp.float32).reshape(feat_dim, 1)
    else:
        params_blk = jnp.stack([es, ls, lb], axis=0)                       # [3, C]
        w2_blk = jnp.asarray(params["classifier2_w"], jnp.float32).reshape(1, feat_dim)
    scalars = jnp.stack([jnp.asarray(params["ensemble_bias"], jnp.float32).reshape(()),
                         jnp.asarray(params["classifier2_b"], jnp.float32).reshape(())])

    tb = _pick_batch_tile(batch, tile_b, align)
    grid = (pl.cdiv(batch, tb),)

    smem = pl.BlockSpec(memory_space=pltpu.MemorySpace.SMEM)
    if batch_last:
        in_specs = [
            smem,                                                           # (2,) biases
            pl.BlockSpec((n_clients, num_c, tb), lambda i: (0, 0, i)),      # logits tile
            pl.BlockSpec((k_feats, feat_dim, tb), lambda i: (0, 0, i)),     # feats tile
            pl.BlockSpec((num_c, tb), lambda i: (0, i)),                    # new_logit tile
            pl.BlockSpec((num_c, 3), lambda i: (0, 0)),                     # merged params (resident)
            pl.BlockSpec((feat_dim, 1), lambda i: (0, 0)),                  # classifier2 w (resident)
        ]
        out_spec = pl.BlockSpec((num_c, tb), lambda i: (0, i))
        out_shape = jax.ShapeDtypeStruct((num_c, batch), new_logit.dtype)
    else:
        in_specs = [
            smem,
            pl.BlockSpec((n_clients, tb, num_c), lambda i: (0, i, 0)),
            pl.BlockSpec((k_feats, tb, feat_dim), lambda i: (0, i, 0)),
            pl.BlockSpec((tb, num_c), lambda i: (i, 0)),
            pl.BlockSpec((3, num_c), lambda i: (0, 0)),
            pl.BlockSpec((1, feat_dim), lambda i: (0, 0)),
        ]
        out_spec = pl.BlockSpec((tb, num_c), lambda i: (i, 0))
        out_shape = jax.ShapeDtypeStruct((batch, num_c), new_logit.dtype)

    cp_kwargs = dict(dimension_semantics=("parallel",))
    if vmem_limit_bytes is not None:
        cp_kwargs["vmem_limit_bytes"] = vmem_limit_bytes

    kernel = functools.partial(_ensemble_highway_kernel, batch_last=batch_last)
    # NOTE: when batch % tb != 0, padded tail rows compute 1/sum_w of garbage (but
    # finite, sigmoid-summed) values; those rows are discarded on writeback.
    return pl.pallas_call(
        kernel,
        out_shape=out_shape,
        grid=grid,
        in_specs=in_specs,
        out_specs=out_spec,
        compiler_params=pltpu.CompilerParams(**cp_kwargs),
    )(scalars, logits, feats, new_logit, params_blk, w2_blk)


def ensemble_highway_reference(params, clients_feature, clients_logit, new_logit):
    """Pure-JAX reference mirroring the torch forward (standard [N,B,C]/[K,B,F] layout)."""
    logits = jnp.asarray(clients_logit).astype(jnp.float32)              # [N, B, C]
    w = jax.nn.sigmoid(
        jnp.einsum("nbc,cd->nbd", logits,
                   jnp.asarray(params["ensemble_scale"], jnp.float32))
        + jnp.asarray(params["ensemble_bias"], jnp.float32))             # [N, B, 1]
    norm1 = jnp.sum(jnp.abs(w), axis=0, keepdims=True)
    weighted_logits = jnp.sum((w / norm1) * logits, axis=0)              # [B, C]
    feats = jnp.asarray(clients_feature)[:8].astype(jnp.float32)         # [K, B, F]
    weighted_feature = jnp.sum(feats * (1.0 / 8.0), axis=0)              # [B, F]
    calib = (weighted_logits * jnp.asarray(params["logit_scale"], jnp.float32)
             + jnp.asarray(params["logit_bias"], jnp.float32))
    carry = jax.nn.sigmoid(
        weighted_feature @ jnp.asarray(params["classifier2_w"], jnp.float32).T
        + jnp.asarray(params["classifier2_b"], jnp.float32))
    return carry * calib + (1.0 - carry) * jnp.asarray(new_logit, jnp.float32)


if __name__ == "__main__":
    # Small shapes: batch=8, num_classes=10, in_feature=32, 8 clients, 8 feature tensors.
    B, C, F, N_CLIENTS, K_FEATS = 8, 10, 32, 8, 8
    key = jax.random.PRNGKey(0)
    k_log, k_feat, k_new, k_es, k_ls, k_lb, k_w2 = jax.random.split(key, 7)

    clients_logit = jax.random.normal(k_log, (N_CLIENTS, B, C), jnp.float32)
    clients_feature = jax.random.normal(k_feat, (K_FEATS, B, F), jnp.float32)
    new_logit = jax.random.normal(k_new, (B, C), jnp.float32)

    params = {
        "ensemble_scale": jnp.ones((C, 1), jnp.float32)
                          + 0.1 * jax.random.normal(k_es, (C, 1), jnp.float32),
        "ensemble_bias": jnp.zeros((1,), jnp.float32),
        "logit_scale": jnp.ones((C,), jnp.float32)
                       + 0.1 * jax.random.normal(k_ls, (C,), jnp.float32),
        "logit_bias": 0.05 * jax.random.normal(k_lb, (C,), jnp.float32),
        "classifier2_w": 0.1 * jax.random.normal(k_w2, (1, F), jnp.float32),
        "classifier2_b": jnp.zeros((1,), jnp.float32),
    }

    ref = ensemble_highway_reference(params, clients_feature, clients_logit, new_logit)

    # 1) Default layout, single tile.
    out = jax.block_until_ready(
        ensemble_highway(params, clients_feature, clients_logit, new_logit))
    assert out.shape == (B, C) and out.dtype == new_logit.dtype
    assert jnp.allclose(out, ref, atol=1e-5, rtol=1e-5)

    # 2) Default layout, multi-step grid with a partial tail (B=200 -> tb=56, 4 steps).
    B2 = 200
    kk = jax.random.split(jax.random.PRNGKey(1), 3)
    cl2 = jax.random.normal(kk[0], (N_CLIENTS, B2, C), jnp.float32)
    cf2 = jax.random.normal(kk[1], (K_FEATS, B2, F), jnp.float32)
    nl2 = jax.random.normal(kk[2], (B2, C), jnp.float32)
    out2 = jax.block_until_ready(ensemble_highway(params, cf2, cl2, nl2))
    ref2 = ensemble_highway_reference(params, cf2, cl2, nl2)
    assert jnp.allclose(out2, ref2, atol=1e-5, rtol=1e-5)

    # 3) Lane-dense batch-last layout, single tile (caller supplies B-last arrays).
    out3 = jax.block_until_ready(
        ensemble_highway(params,
                         jnp.transpose(clients_feature, (0, 2, 1)),
                         jnp.transpose(clients_logit, (0, 2, 1)),
                         new_logit.T, batch_last=True))
    assert out3.shape == (C, B)
    assert jnp.allclose(out3.T, ref, atol=1e-5, rtol=1e-5)

    # 4) Lane-dense batch-last layout with 128-lane tiling (B=256 -> tb=128, 2 steps).
    B3 = 256
    kk3 = jax.random.split(jax.random.PRNGKey(2), 3)
    cl3 = jax.random.normal(kk3[0], (N_CLIENTS, C, B3), jnp.float32)
    cf3 = jax.random.normal(kk3[1], (K_FEATS, F, B3), jnp.float32)
    nl3 = jax.random.normal(kk3[2], (C, B3), jnp.float32)
    out4 = jax.block_until_ready(
        ensemble_highway(params, cf3, cl3, nl3, batch_last=True))
    ref4 = ensemble_highway_reference(params,
                                      jnp.transpose(cf3, (0, 2, 1)),
                                      jnp.transpose(cl3, (0, 2, 1)), nl3.T)
    assert jnp.allclose(out4.T, ref4, atol=1e-5, rtol=1e-5)

    print("KERNEL_OK")
</pallas_src>

<mosaic_0001>
module attributes {stable_mosaic.version = 11 : i64} {
  func.func @_ensemble_highway_kernel(%arg0: i32, %arg1: memref<2xf32, #tpu.memory_space<smem>>, %arg2: memref<8x8x10xf32, #tpu.memory_space<vmem>>, %arg3: memref<8x8x32xf32, #tpu.memory_space<vmem>>, %arg4: memref<8x10xf32, #tpu.memory_space<vmem>>, %arg5: memref<3x10xf32, #tpu.memory_space<vmem>>, %arg6: memref<1x32xf32, #tpu.memory_space<vmem>>, %arg7: memref<8x10xf32, #tpu.memory_space<vmem>>) attributes {dimension_semantics = [#tpu.dimension_semantics<parallel>], iteration_bounds = array<i64: 1>, scalar_prefetch = 0 : i64, scratch_operands = 0 : i64, tpu.core_type = #tpu.core_type<tc>, window_params = [{transform_indices = @transform_0, window_bounds = array<i64: 2>}, {transform_indices = @transform_1, window_bounds = array<i64: 8, 8, 10>}, {transform_indices = @transform_2, window_bounds = array<i64: 8, 8, 32>}, {transform_indices = @transform_3, window_bounds = array<i64: 8, 10>}, {pipeline_mode = #tpu.pipeline_mode<synchronous>, transform_indices = @transform_4, window_bounds = array<i64: 3, 10>}, {pipeline_mode = #tpu.pipeline_mode<synchronous>, transform_indices = @transform_5, window_bounds = array<i64: 1, 32>}, {transform_indices = @transform_6, window_bounds = array<i64: 8, 10>}]} {
    %c0 = arith.constant 0 : index
    %c0_0 = arith.constant 0 : index
    %0 = vector.load %arg5[%c0, %c0_0] : memref<3x10xf32, #tpu.memory_space<vmem>>, vector<3x10xf32>
    %1 = vector.extract_strided_slice %0 {offsets = [0, 0], sizes = [1, 10], strides = [1, 1]} : vector<3x10xf32> to vector<1x10xf32>
    %2 = vector.extract_strided_slice %0 {offsets = [1, 0], sizes = [1, 10], strides = [1, 1]} : vector<3x10xf32> to vector<1x10xf32>
    %3 = vector.extract_strided_slice %0 {offsets = [2, 0], sizes = [1, 10], strides = [1, 1]} : vector<3x10xf32> to vector<1x10xf32>
    %c0_1 = arith.constant 0 : index
    %c0_2 = arith.constant 0 : index
    %4 = vector.load %arg6[%c0_1, %c0_2] : memref<1x32xf32, #tpu.memory_space<vmem>>, vector<1x32xf32>
    %c0_3 = arith.constant 0 : index
    %5 = memref.load %arg1[%c0_3] : memref<2xf32, #tpu.memory_space<smem>>
    %c1 = arith.constant 1 : index
    %6 = memref.load %arg1[%c1] : memref<2xf32, #tpu.memory_space<smem>>
    %cst = arith.constant 0.000000e+00 : f32
    %7 = vector.broadcast %cst : f32 to vector<8x1xf32>
    %cst_4 = arith.constant 0.000000e+00 : f32
    %8 = vector.broadcast %cst_4 : f32 to vector<8x10xf32>
    %c0_i32 = arith.constant 0 : i32
    %9 = arith.index_cast %c0_i32 : i32 to index
    %c0_5 = arith.constant 0 : index
    %c0_6 = arith.constant 0 : index
    %10 = vector.load %arg2[%9, %c0_5, %c0_6] : memref<8x8x10xf32, #tpu.memory_space<vmem>>, vector<1x8x10xf32>
    %11 = vector.shape_cast %10 : vector<1x8x10xf32> to vector<8x10xf32>
    %12 = vector.broadcast %1 : vector<1x10xf32> to vector<8x10xf32>
    %13 = arith.mulf %11, %12 : vector<8x10xf32>
    %cst_7 = arith.constant dense<0.000000e+00> : vector<8xf32>
    %14 = vector.multi_reduction <add>, %13, %cst_7 [1] : vector<8x10xf32> to vector<8xf32>
    %15 = vector.shape_cast %14 : vector<8xf32> to vector<8x1xf32>
    %16 = vector.broadcast %5 : f32 to vector<8x1xf32>
    %17 = arith.addf %15, %16 : vector<8x1xf32>
    %18 = arith.negf %17 : vector<8x1xf32>
    %19 = math.exp %18 : vector<8x1xf32>
    %cst_8 = arith.constant 1.000000e+00 : f32
    %20 = vector.broadcast %cst_8 : f32 to vector<8x1xf32>
    %21 = arith.addf %20, %19 : vector<8x1xf32>
    %22 = arith.divf %20, %21 : vector<8x1xf32>
    %23 = arith.addf %7, %22 : vector<8x1xf32>
    %24 = vector.broadcast %22 : vector<8x1xf32> to vector<8x10xf32>
    %25 = arith.mulf %24, %11 : vector<8x10xf32>
    %26 = arith.addf %8, %25 : vector<8x10xf32>
    %c1_i32 = arith.constant 1 : i32
    %27 = arith.index_cast %c1_i32 : i32 to index
    %c0_9 = arith.constant 0 : index
    %c0_10 = arith.constant 0 : index
    %28 = vector.load %arg2[%27, %c0_9, %c0_10] : memref<8x8x10xf32, #tpu.memory_space<vmem>>, vector<1x8x10xf32>
    %29 = vector.shape_cast %28 : vector<1x8x10xf32> to vector<8x10xf32>
    %30 = vector.broadcast %1 : vector<1x10xf32> to vector<8x10xf32>
    %31 = arith.mulf %29, %30 : vector<8x10xf32>
    %cst_11 = arith.constant dense<0.000000e+00> : vector<8xf32>
    %32 = vector.multi_reduction <add>, %31, %cst_11 [1] : vector<8x10xf32> to vector<8xf32>
    %33 = vector.shape_cast %32 : vector<8xf32> to vector<8x1xf32>
    %34 = vector.broadcast %5 : f32 to vector<8x1xf32>
    %35 = arith.addf %33, %34 : vector<8x1xf32>
    %36 = arith.negf %35 : vector<8x1xf32>
    %37 = math.exp %36 : vector<8x1xf32>
    %cst_12 = arith.constant 1.000000e+00 : f32
    %38 = vector.broadcast %cst_12 : f32 to vector<8x1xf32>
    %39 = arith.addf %38, %37 : vector<8x1xf32>
    %40 = arith.divf %38, %39 : vector<8x1xf32>
    %41 = arith.addf %23, %40 : vector<8x1xf32>
    %42 = vector.broadcast %40 : vector<8x1xf32> to vector<8x10xf32>
    %43 = arith.mulf %42, %29 : vector<8x10xf32>
    %44 = arith.addf %26, %43 : vector<8x10xf32>
    %c2_i32 = arith.constant 2 : i32
    %45 = arith.index_cast %c2_i32 : i32 to index
    %c0_13 = arith.constant 0 : index
    %c0_14 = arith.constant 0 : index
    %46 = vector.load %arg2[%45, %c0_13, %c0_14] : memref<8x8x10xf32, #tpu.memory_space<vmem>>, vector<1x8x10xf32>
    %47 = vector.shape_cast %46 : vector<1x8x10xf32> to vector<8x10xf32>
    %48 = vector.broadcast %1 : vector<1x10xf32> to vector<8x10xf32>
    %49 = arith.mulf %47, %48 : vector<8x10xf32>
    %cst_15 = arith.constant dense<0.000000e+00> : vector<8xf32>
    %50 = vector.multi_reduction <add>, %49, %cst_15 [1] : vector<8x10xf32> to vector<8xf32>
    %51 = vector.shape_cast %50 : vector<8xf32> to vector<8x1xf32>
    %52 = vector.broadcast %5 : f32 to vector<8x1xf32>
    %53 = arith.addf %51, %52 : vector<8x1xf32>
    %54 = arith.negf %53 : vector<8x1xf32>
    %55 = math.exp %54 : vector<8x1xf32>
    %cst_16 = arith.constant 1.000000e+00 : f32
    %56 = vector.broadcast %cst_16 : f32 to vector<8x1xf32>
    %57 = arith.addf %56, %55 : vector<8x1xf32>
    %58 = arith.divf %56, %57 : vector<8x1xf32>
    %59 = arith.addf %41, %58 : vector<8x1xf32>
    %60 = vector.broadcast %58 : vector<8x1xf32> to vector<8x10xf32>
    %61 = arith.mulf %60, %47 : vector<8x10xf32>
    %62 = arith.addf %44, %61 : vector<8x10xf32>
    %c3_i32 = arith.constant 3 : i32
    %63 = arith.index_cast %c3_i32 : i32 to index
    %c0_17 = arith.constant 0 : index
    %c0_18 = arith.constant 0 : index
    %64 = vector.load %arg2[%63, %c0_17, %c0_18] : memref<8x8x10xf32, #tpu.memory_space<vmem>>, vector<1x8x10xf32>
    %65 = vector.shape_cast %64 : vector<1x8x10xf32> to vector<8x10xf32>
    %66 = vector.broadcast %1 : vector<1x10xf32> to vector<8x10xf32>
    %67 = arith.mulf %65, %66 : vector<8x10xf32>
    %cst_19 = arith.constant dense<0.000000e+00> : vector<8xf32>
    %68 = vector.multi_reduction <add>, %67, %cst_19 [1] : vector<8x10xf32> to vector<8xf32>
    %69 = vector.shape_cast %68 : vector<8xf32> to vector<8x1xf32>
    %70 = vector.broadcast %5 : f32 to vector<8x1xf32>
    %71 = arith.addf %69, %70 : vector<8x1xf32>
    %72 = arith.negf %71 : vector<8x1xf32>
    %73 = math.exp %72 : vector<8x1xf32>
    %cst_20 = arith.constant 1.000000e+00 : f32
    %74 = vector.broadcast %cst_20 : f32 to vector<8x1xf32>
    %75 = arith.addf %74, %73 : vector<8x1xf32>
    %76 = arith.divf %74, %75 : vector<8x1xf32>
    %77 = arith.addf %59, %76 : vector<8x1xf32>
    %78 = vector.broadcast %76 : vector<8x1xf32> to vector<8x10xf32>
    %79 = arith.mulf %78, %65 : vector<8x10xf32>
    %80 = arith.addf %62, %79 : vector<8x10xf32>
    %c4_i32 = arith.constant 4 : i32
    %81 = arith.index_cast %c4_i32 : i32 to index
    %c0_21 = arith.constant 0 : index
    %c0_22 = arith.constant 0 : index
    %82 = vector.load %arg2[%81, %c0_21, %c0_22] : memref<8x8x10xf32, #tpu.memory_space<vmem>>, vector<1x8x10xf32>
    %83 = vector.shape_cast %82 : vector<1x8x10xf32> to vector<8x10xf32>
    %84 = vector.broadcast %1 : vector<1x10xf32> to vector<8x10xf32>
    %85 = arith.mulf %83, %84 : vector<8x10xf32>
    %cst_23 = arith.constant dense<0.000000e+00> : vector<8xf32>
    %86 = vector.multi_reduction <add>, %85, %cst_23 [1] : vector<8x10xf32> to vector<8xf32>
    %87 = vector.shape_cast %86 : vector<8xf32> to vector<8x1xf32>
    %88 = vector.broadcast %5 : f32 to vector<8x1xf32>
    %89 = arith.addf %87, %88 : vector<8x1xf32>
    %90 = arith.negf %89 : vector<8x1xf32>
    %91 = math.exp %90 : vector<8x1xf32>
    %cst_24 = arith.constant 1.000000e+00 : f32
    %92 = vector.broadcast %cst_24 : f32 to vector<8x1xf32>
    %93 = arith.addf %92, %91 : vector<8x1xf32>
    %94 = arith.divf %92, %93 : vector<8x1xf32>
    %95 = arith.addf %77, %94 : vector<8x1xf32>
    %96 = vector.broadcast %94 : vector<8x1xf32> to vector<8x10xf32>
    %97 = arith.mulf %96, %83 : vector<8x10xf32>
    %98 = arith.addf %80, %97 : vector<8x10xf32>
    %c5_i32 = arith.constant 5 : i32
    %99 = arith.index_cast %c5_i32 : i32 to index
    %c0_25 = arith.constant 0 : index
    %c0_26 = arith.constant 0 : index
    %100 = vector.load %arg2[%99, %c0_25, %c0_26] : memref<8x8x10xf32, #tpu.memory_space<vmem>>, vector<1x8x10xf32>
    %101 = vector.shape_cast %100 : vector<1x8x10xf32> to vector<8x10xf32>
    %102 = vector.broadcast %1 : vector<1x10xf32> to vector<8x10xf32>
    %103 = arith.mulf %101, %102 : vector<8x10xf32>
    %cst_27 = arith.constant dense<0.000000e+00> : vector<8xf32>
    %104 = vector.multi_reduction <add>, %103, %cst_27 [1] : vector<8x10xf32> to vector<8xf32>
    %105 = vector.shape_cast %104 : vector<8xf32> to vector<8x1xf32>
    %106 = vector.broadcast %5 : f32 to vector<8x1xf32>
    %107 = arith.addf %105, %106 : vector<8x1xf32>
    %108 = arith.negf %107 : vector<8x1xf32>
    %109 = math.exp %108 : vector<8x1xf32>
    %cst_28 = arith.constant 1.000000e+00 : f32
    %110 = vector.broadcast %cst_28 : f32 to vector<8x1xf32>
    %111 = arith.addf %110, %109 : vector<8x1xf32>
    %112 = arith.divf %110, %111 : vector<8x1xf32>
    %113 = arith.addf %95, %112 : vector<8x1xf32>
    %114 = vector.broadcast %112 : vector<8x1xf32> to vector<8x10xf32>
    %115 = arith.mulf %114, %101 : vector<8x10xf32>
    %116 = arith.addf %98, %115 : vector<8x10xf32>
    %c6_i32 = arith.constant 6 : i32
    %117 = arith.index_cast %c6_i32 : i32 to index
    %c0_29 = arith.constant 0 : index
    %c0_30 = arith.constant 0 : index
    %118 = vector.load %arg2[%117, %c0_29, %c0_30] : memref<8x8x10xf32, #tpu.memory_space<vmem>>, vector<1x8x10xf32>
    %119 = vector.shape_cast %118 : vector<1x8x10xf32> to vector<8x10xf32>
    %120 = vector.broadcast %1 : vector<1x10xf32> to vector<8x10xf32>
    %121 = arith.mulf %119, %120 : vector<8x10xf32>
    %cst_31 = arith.constant dense<0.000000e+00> : vector<8xf32>
    %122 = vector.multi_reduction <add>, %121, %cst_31 [1] : vector<8x10xf32> to vector<8xf32>
    %123 = vector.shape_cast %122 : vector<8xf32> to vector<8x1xf32>
    %124 = vector.broadcast %5 : f32 to vector<8x1xf32>
    %125 = arith.addf %123, %124 : vector<8x1xf32>
    %126 = arith.negf %125 : vector<8x1xf32>
    %127 = math.exp %126 : vector<8x1xf32>
    %cst_32 = arith.constant 1.000000e+00 : f32
    %128 = vector.broadcast %cst_32 : f32 to vector<8x1xf32>
    %129 = arith.addf %128, %127 : vector<8x1xf32>
    %130 = arith.divf %128, %129 : vector<8x1xf32>
    %131 = arith.addf %113, %130 : vector<8x1xf32>
    %132 = vector.broadcast %130 : vector<8x1xf32> to vector<8x10xf32>
    %133 = arith.mulf %132, %119 : vector<8x10xf32>
    %134 = arith.addf %116, %133 : vector<8x10xf32>
    %c7_i32 = arith.constant 7 : i32
    %135 = arith.index_cast %c7_i32 : i32 to index
    %c0_33 = arith.constant 0 : index
    %c0_34 = arith.constant 0 : index
    %136 = vector.load %arg2[%135, %c0_33, %c0_34] : memref<8x8x10xf32, #tpu.memory_space<vmem>>, vector<1x8x10xf32>
    %137 = vector.shape_cast %136 : vector<1x8x10xf32> to vector<8x10xf32>
    %138 = vector.broadcast %1 : vector<1x10xf32> to vector<8x10xf32>
    %139 = arith.mulf %137, %138 : vector<8x10xf32>
    %cst_35 = arith.constant dense<0.000000e+00> : vector<8xf32>
    %140 = vector.multi_reduction <add>, %139, %cst_35 [1] : vector<8x10xf32> to vector<8xf32>
    %141 = vector.shape_cast %140 : vector<8xf32> to vector<8x1xf32>
    %142 = vector.broadcast %5 : f32 to vector<8x1xf32>
    %143 = arith.addf %141, %142 : vector<8x1xf32>
    %144 = arith.negf %143 : vector<8x1xf32>
    %145 = math.exp %144 : vector<8x1xf32>
    %cst_36 = arith.constant 1.000000e+00 : f32
    %146 = vector.broadcast %cst_36 : f32 to vector<8x1xf32>
    %147 = arith.addf %146, %145 : vector<8x1xf32>
    %148 = arith.divf %146, %147 : vector<8x1xf32>
    %149 = arith.addf %131, %148 : vector<8x1xf32>
    %150 = vector.broadcast %148 : vector<8x1xf32> to vector<8x10xf32>
    %151 = arith.mulf %150, %137 : vector<8x10xf32>
    %152 = arith.addf %134, %151 : vector<8x10xf32>
    %c8_i32 = arith.constant 8 : i32
    %153 = tpu.reciprocal %149 : vector<8x1xf32> -> vector<8x1xf32>
    %154 = vector.broadcast %153 : vector<8x1xf32> to vector<8x10xf32>
    %155 = arith.mulf %152, %154 : vector<8x10xf32>
    %156 = vector.broadcast %2 : vector<1x10xf32> to vector<8x10xf32>
    %157 = arith.mulf %155, %156 : vector<8x10xf32>
    %158 = vector.broadcast %3 : vector<1x10xf32> to vector<8x10xf32>
    %159 = arith.addf %157, %158 : vector<8x10xf32>
    %cst_37 = arith.constant 0.000000e+00 : f32
    %160 = vector.broadcast %cst_37 : f32 to vector<8x1xf32>
    %c0_i32_38 = arith.constant 0 : i32
    %161 = arith.index_cast %c0_i32_38 : i32 to index
    %c0_39 = arith.constant 0 : index
    %c0_40 = arith.constant 0 : index
    %162 = vector.load %arg3[%161, %c0_39, %c0_40] : memref<8x8x32xf32, #tpu.memory_space<vmem>>, vector<1x8x32xf32>
    %163 = vector.shape_cast %162 : vector<1x8x32xf32> to vector<8x32xf32>
    %164 = vector.broadcast %4 : vector<1x32xf32> to vector<8x32xf32>
    %165 = arith.mulf %163, %164 : vector<8x32xf32>
    %cst_41 = arith.constant dense<0.000000e+00> : vector<8xf32>
    %166 = vector.multi_reduction <add>, %165, %cst_41 [1] : vector<8x32xf32> to vector<8xf32>
    %167 = vector.shape_cast %166 : vector<8xf32> to vector<8x1xf32>
    %168 = arith.addf %160, %167 : vector<8x1xf32>
    %c1_i32_42 = arith.constant 1 : i32
    %169 = arith.index_cast %c1_i32_42 : i32 to index
    %c0_43 = arith.constant 0 : index
    %c0_44 = arith.constant 0 : index
    %170 = vector.load %arg3[%169, %c0_43, %c0_44] : memref<8x8x32xf32, #tpu.memory_space<vmem>>, vector<1x8x32xf32>
    %171 = vector.shape_cast %170 : vector<1x8x32xf32> to vector<8x32xf32>
    %172 = vector.broadcast %4 : vector<1x32xf32> to vector<8x32xf32>
    %173 = arith.mulf %171, %172 : vector<8x32xf32>
    %cst_45 = arith.constant dense<0.000000e+00> : vector<8xf32>
    %174 = vector.multi_reduction <add>, %173, %cst_45 [1] : vector<8x32xf32> to vector<8xf32>
    %175 = vector.shape_cast %174 : vector<8xf32> to vector<8x1xf32>
    %176 = arith.addf %168, %175 : vector<8x1xf32>
    %c2_i32_46 = arith.constant 2 : i32
    %177 = arith.index_cast %c2_i32_46 : i32 to index
    %c0_47 = arith.constant 0 : index
    %c0_48 = arith.constant 0 : index
    %178 = vector.load %arg3[%177, %c0_47, %c0_48] : memref<8x8x32xf32, #tpu.memory_space<vmem>>, vector<1x8x32xf32>
    %179 = vector.shape_cast %178 : vector<1x8x32xf32> to vector<8x32xf32>
    %180 = vector.broadcast %4 : vector<1x32xf32> to vector<8x32xf32>
    %181 = arith.mulf %179, %180 : vector<8x32xf32>
    %cst_49 = arith.constant dense<0.000000e+00> : vector<8xf32>
    %182 = vector.multi_reduction <add>, %181, %cst_49 [1] : vector<8x32xf32> to vector<8xf32>
    %183 = vector.shape_cast %182 : vector<8xf32> to vector<8x1xf32>
    %184 = arith.addf %176, %183 : vector<8x1xf32>
    %c3_i32_50 = arith.constant 3 : i32
    %185 = arith.index_cast %c3_i32_50 : i32 to index
    %c0_51 = arith.constant 0 : index
    %c0_52 = arith.constant 0 : index
    %186 = vector.load %arg3[%185, %c0_51, %c0_52] : memref<8x8x32xf32, #tpu.memory_space<vmem>>, vector<1x8x32xf32>
    %187 = vector.shape_cast %186 : vector<1x8x32xf32> to vector<8x32xf32>
    %188 = vector.broadcast %4 : vector<1x32xf32> to vector<8x32xf32>
    %189 = arith.mulf %187, %188 : vector<8x32xf32>
    %cst_53 = arith.constant dense<0.000000e+00> : vector<8xf32>
    %190 = vector.multi_reduction <add>, %189, %cst_53 [1] : vector<8x32xf32> to vector<8xf32>
    %191 = vector.shape_cast %190 : vector<8xf32> to vector<8x1xf32>
    %192 = arith.addf %184, %191 : vector<8x1xf32>
    %c4_i32_54 = arith.constant 4 : i32
    %193 = arith.index_cast %c4_i32_54 : i32 to index
    %c0_55 = arith.constant 0 : index
    %c0_56 = arith.constant 0 : index
    %194 = vector.load %arg3[%193, %c0_55, %c0_56] : memref<8x8x32xf32, #tpu.memory_space<vmem>>, vector<1x8x32xf32>
    %195 = vector.shape_cast %194 : vector<1x8x32xf32> to vector<8x32xf32>
    %196 = vector.broadcast %4 : vector<1x32xf32> to vector<8x32xf32>
    %197 = arith.mulf %195, %196 : vector<8x32xf32>
    %cst_57 = arith.constant dense<0.000000e+00> : vector<8xf32>
    %198 = vector.multi_reduction <add>, %197, %cst_57 [1] : vector<8x32xf32> to vector<8xf32>
    %199 = vector.shape_cast %198 : vector<8xf32> to vector<8x1xf32>
    %200 = arith.addf %192, %199 : vector<8x1xf32>
    %c5_i32_58 = arith.constant 5 : i32
    %201 = arith.index_cast %c5_i32_58 : i32 to index
    %c0_59 = arith.constant 0 : index
    %c0_60 = arith.constant 0 : index
    %202 = vector.load %arg3[%201, %c0_59, %c0_60] : memref<8x8x32xf32, #tpu.memory_space<vmem>>, vector<1x8x32xf32>
    %203 = vector.shape_cast %202 : vector<1x8x32xf32> to vector<8x32xf32>
    %204 = vector.broadcast %4 : vector<1x32xf32> to vector<8x32xf32>
    %205 = arith.mulf %203, %204 : vector<8x32xf32>
    %cst_61 = arith.constant dense<0.000000e+00> : vector<8xf32>
    %206 = vector.multi_reduction <add>, %205, %cst_61 [1] : vector<8x32xf32> to vector<8xf32>
    %207 = vector.shape_cast %206 : vector<8xf32> to vector<8x1xf32>
    %208 = arith.addf %200, %207 : vector<8x1xf32>
    %c6_i32_62 = arith.constant 6 : i32
    %209 = arith.index_cast %c6_i32_62 : i32 to index
    %c0_63 = arith.constant 0 : index
    %c0_64 = arith.constant 0 : index
    %210 = vector.load %arg3[%209, %c0_63, %c0_64] : memref<8x8x32xf32, #tpu.memory_space<vmem>>, vector<1x8x32xf32>
    %211 = vector.shape_cast %210 : vector<1x8x32xf32> to vector<8x32xf32>
    %212 = vector.broadcast %4 : vector<1x32xf32> to vector<8x32xf32>
    %213 = arith.mulf %211, %212 : vector<8x32xf32>
    %cst_65 = arith.constant dense<0.000000e+00> : vector<8xf32>
    %214 = vector.multi_reduction <add>, %213, %cst_65 [1] : vector<8x32xf32> to vector<8xf32>
    %215 = vector.shape_cast %214 : vector<8xf32> to vector<8x1xf32>
    %216 = arith.addf %208, %215 : vector<8x1xf32>
    %c7_i32_66 = arith.constant 7 : i32
    %217 = arith.index_cast %c7_i32_66 : i32 to index
    %c0_67 = arith.constant 0 : index
    %c0_68 = arith.constant 0 : index
    %218 = vector.load %arg3[%217, %c0_67, %c0_68] : memref<8x8x32xf32, #tpu.memory_space<vmem>>, vector<1x8x32xf32>
    %219 = vector.shape_cast %218 : vector<1x8x32xf32> to vector<8x32xf32>
    %220 = vector.broadcast %4 : vector<1x32xf32> to vector<8x32xf32>
    %221 = arith.mulf %219, %220 : vector<8x32xf32>
    %cst_69 = arith.constant dense<0.000000e+00> : vector<8xf32>
    %222 = vector.multi_reduction <add>, %221, %cst_69 [1] : vector<8x32xf32> to vector<8xf32>
    %223 = vector.shape_cast %222 : vector<8xf32> to vector<8x1xf32>
    %224 = arith.addf %216, %223 : vector<8x1xf32>
    %c8_i32_70 = arith.constant 8 : i32
    %cst_71 = arith.constant 1.250000e-01 : f32
    %225 = vector.broadcast %cst_71 : f32 to vector<8x1xf32>
    %226 = arith.mulf %224, %225 : vector<8x1xf32>
    %227 = vector.broadcast %6 : f32 to vector<8x1xf32>
    %228 = arith.addf %226, %227 : vector<8x1xf32>
    %229 = arith.negf %228 : vector<8x1xf32>
    %230 = math.exp %229 : vector<8x1xf32>
    %cst_72 = arith.constant 1.000000e+00 : f32
    %231 = vector.broadcast %cst_72 : f32 to vector<8x1xf32>
    %232 = arith.addf %231, %230 : vector<8x1xf32>
    %233 = arith.divf %231, %232 : vector<8x1xf32>
    %c0_73 = arith.constant 0 : index
    %c0_74 = arith.constant 0 : index
    %234 = vector.load %arg4[%c0_73, %c0_74] : memref<8x10xf32, #tpu.memory_space<vmem>>, vector<8x10xf32>
    %235 = vector.broadcast %233 : vector<8x1xf32> to vector<8x10xf32>
    %236 = arith.mulf %235, %159 : vector<8x10xf32>
    %cst_75 = arith.constant 1.000000e+00 : f32
    %237 = vector.broadcast %cst_75 : f32 to vector<8x1xf32>
    %238 = arith.subf %237, %233 : vector<8x1xf32>
    %239 = vector.broadcast %238 : vector<8x1xf32> to vector<8x10xf32>
    %240 = arith.mulf %239, %234 : vector<8x10xf32>
    %241 = arith.addf %236, %240 : vector<8x10xf32>
    %c0_76 = arith.constant 0 : index
    %c0_77 = arith.constant 0 : index
    %242 = vector.load %arg7[%c0_76, %c0_77] : memref<8x10xf32, #tpu.memory_space<vmem>>, vector<8x10xf32>
    tpu.vector_store %arg7[%c0_76, %c0_77], %241 {strides = array<i32>} : memref<8x10xf32, #tpu.memory_space<vmem>>, vector<8x10xf32>,
    return
  }
  func.func @transform_0(%arg0: i32) -> i32 {
    %c0_i32 = arith.constant 0 : i32
    %c0_i32_0 = arith.constant 0 : i32
    return %c0_i32 : i32
  }
  func.func @transform_1(%arg0: i32) -> (i32, i32, i32) {
    %c0_i32 = arith.constant 0 : i32
    %c0_i32_0 = arith.constant 0 : i32
    %c0_i32_1 = arith.constant 0 : i32
    return %c0_i32, %arg0, %c0_i32_0 : i32, i32, i32
  }
  func.func @transform_2(%arg0: i32) -> (i32, i32, i32) {
    %c0_i32 = arith.constant 0 : i32
    %c0_i32_0 = arith.constant 0 : i32
    %c0_i32_1 = arith.constant 0 : i32
    return %c0_i32, %arg0, %c0_i32_0 : i32, i32, i32
  }
  func.func @transform_3(%arg0: i32) -> (i32, i32) {
    %c0_i32 = arith.constant 0 : i32
    %c0_i32_0 = arith.constant 0 : i32
    return %arg0, %c0_i32 : i32, i32
  }
  func.func @transform_4(%arg0: i32) -> (i32, i32) {
    %c0_i32 = arith.constant 0 : i32
    %c0_i32_0 = arith.constant 0 : i32
    %c0_i32_1 = arith.constant 0 : i32
    return %c0_i32, %c0_i32_0 : i32, i32
  }
  func.func @transform_5(%arg0: i32) -> (i32, i32) {
    %c0_i32 = arith.constant 0 : i32
    %c0_i32_0 = arith.constant 0 : i32
    %c0_i32_1 = arith.constant 0 : i32
    return %c0_i32, %c0_i32_0 : i32, i32
  }
  func.func @transform_6(%arg0: i32) -> (i32, i32) {
    %c0_i32 = arith.constant 0 : i32
    %c0_i32_0 = arith.constant 0 : i32
    return %arg0, %c0_i32 : i32, i32
  }
}

</mosaic_0001>

<llo_original>
// kernel: tpu_custom_call.1
$region0: #{tpu_custom_call.1}
  #allocation0 [shape = 'u32[]', space=smem, size = 0x4, offset = 0x4, fixed_abs, tag = 'smem constant byte address 0x4 - core index']
  #allocation1 [shape = 'u32[144,128]{1,0:T(1,128)}', space=vmem, size = 0x12000, scoped, tag = 'internal scratch']
  %s0 = inlined_call_operand.hbm [shape: f32[2], index: 0, kind: input, shape index: {}]
  %s1 = inlined_call_operand.hbm [shape: f32[8,8,10], index: 1, kind: input, shape index: {}]
  %s2 = inlined_call_operand.hbm [shape: f32[8,8,32], index: 2, kind: input, shape index: {}]
  %s3 = inlined_call_operand.vmem [shape: f32[8,10], index: 3, kind: input, shape index: {}]
  %s4 = inlined_call_operand.vmem [shape: f32[3,10], index: 4, kind: input, shape index: {}]
  %s5 = inlined_call_operand.vmem [shape: f32[1,32], index: 5, kind: input, shape index: {}]
  %s6 = inlined_call_operand.hbm [shape: f32[8,10], index: 6, kind: output, shape index: {}]
  %s7 = sld [smem:[#allocation0]]
  $region46: #{tpu_custom_call.1} parent=0
    _
  %s9 = ssub.s32 1, %s7
  %s10 = scalar_select 0, %s9, %s7
  $region1: #{tpu_custom_call.1} parent=0
    #allocation2 [shape = 'u8[512]{0}', space=smem, size = 0x200, scoped, tag = 'input window, operand 0, single buffered']
    #allocation3 [shape = 's32[1]{0}', space=sflag, size = 0x4, scoped, tag = 'scoped memory for tpu_custom_call.1']
    #allocation4 [shape = 's32[1]{0}', space=sflag, size = 0x4, scoped, tag = 'scoped memory for tpu_custom_call.1']
    #allocation5 [shape = 's32[1]{0}', space=sflag, size = 0x4, scoped, tag = 'scoped memory for tpu_custom_call.1']
    #allocation6 [shape = 'u8[32768]{0}', space=vmem, size = 0x8000, scoped, tag = 'input window, operand 1, single buffered']
    #allocation7 [shape = 'u8[32768]{0}', space=vmem, size = 0x8000, scoped, tag = 'input window, operand 2, single buffered']
    #allocation8 [shape = 's32[1]{0}', space=sflag, size = 0x4, scoped, tag = 'scoped memory for tpu_custom_call.1']
    #allocation9 [shape = 'u8[4096]{0}', space=vmem, size = 0x1000, scoped, tag = 'output window, operand 0, single buffered']
    %11 = vsyncpa [#allocation5], 0
    %12 = vsyncpa [#allocation3], 0
    %13 = vsyncpa [#allocation8], 0
    %14 = vsyncpa [#allocation4], 0
    // Predicated region
    $region2: #{tpu_custom_call.1} parent=1 // pred_check
      _
    $region3: #{tpu_custom_call.1} parent=1 // pred_check_branch
      %16 = sbr.rel (0) target = $region5
    $region4: #{tpu_custom_call.1} parent=1 // pred_region
      %s18 = ssub.s32 16, 16
      %19 = vsyncadd [#allocation5], %s18
      %22 = dma.hbm_to_smem %s0, 16, [#allocation2], [#allocation5]
    $region5: #{tpu_custom_call.1} parent=1 // pred_fallthru
      _
    // Predicated region
    $region6: #{tpu_custom_call.1} parent=1 // pred_check
      _
    $region7: #{tpu_custom_call.1} parent=1 // pred_check_branch
      %24 = sbr.rel (0) target = $region9
    $region8: #{tpu_custom_call.1} parent=1 // pred_region
      %s26 = ssub.s32 1024, 1024
      %27 = vsyncadd [#allocation3], %s26
      %s28 = sshll.u32 [#allocation6], 4
      %s29 = int_to_ptr.vmem [resolvable:$true] %s28
      %34 = dma.hbm_to_vmem [thread:$0]  %s1, 1024, %s29, [#allocation3], 128, 128, 8
    $region9: #{tpu_custom_call.1} parent=1 // pred_fallthru
      _
    // Predicated region
    $region10: #{tpu_custom_call.1} parent=1 // pred_check
      _
    $region11: #{tpu_custom_call.1} parent=1 // pred_check_branch
      %36 = sbr.rel (0) target = $region13
    $region12: #{tpu_custom_call.1} parent=1 // pred_region
      %s38 = ssub.s32 1024, 1024
      %39 = vsyncadd [#allocation8], %s38
      %s40 = sshll.u32 [#allocation7], 4
      %s41 = int_to_ptr.vmem [resolvable:$true] %s40
      %46 = dma.hbm_to_vmem [thread:$0]  %s2, 1024, %s41, [#allocation8], 128, 128, 8
    $region13: #{tpu_custom_call.1} parent=1 // pred_fallthru
      _
    // Predicated region
    $region14: #{tpu_custom_call.1} parent=1 // pred_check
      _
    $region15: #{tpu_custom_call.1} parent=1 // pred_check_branch
      %48 = sbr.rel (0) target = $region17
    $region16: #{tpu_custom_call.1} parent=1 // pred_region
      _
    $region17: #{tpu_custom_call.1} parent=1 // pred_fallthru
      _
    // Predicated region
    $region18: #{tpu_custom_call.1} parent=1 // pred_check
      _
    $region19: #{tpu_custom_call.1} parent=1 // pred_check_branch
      %50 = sbr.rel (0) target = $region21
    $region20: #{tpu_custom_call.1} parent=1 // pred_region
      _
    $region21: #{tpu_custom_call.1} parent=1 // pred_fallthru
      _
    // Predicated region
    $region22: #{tpu_custom_call.1} parent=1 // pred_check
      _
    $region23: #{tpu_custom_call.1} parent=1 // pred_check_branch
      %52 = sbr.rel (0) target = $region25
    $region24: #{tpu_custom_call.1} parent=1 // pred_region
      _
    $region25: #{tpu_custom_call.1} parent=1 // pred_fallthru
      _
    // Predicated region
    $region26: #{tpu_custom_call.1} parent=1 // pred_check
      _
    $region27: #{tpu_custom_call.1} parent=1 // pred_check_branch
      %54 = sbr.rel (0) target = $region29
    $region28: #{tpu_custom_call.1} parent=1 // pred_region
      %55 = dma.done [#allocation5], 16
    $region29: #{tpu_custom_call.1} parent=1 // pred_fallthru
      _
    // Predicated region
    $region30: #{tpu_custom_call.1} parent=1 // pred_check
      _
    $region31: #{tpu_custom_call.1} parent=1 // pred_check_branch
      %57 = sbr.rel (0) target = $region33
    $region32: #{tpu_custom_call.1} parent=1 // pred_region
      %58 = dma.done [#allocation3], 1024
    $region33: #{tpu_custom_call.1} parent=1 // pred_fallthru
      _
    // Predicated region
    $region34: #{tpu_custom_call.1} parent=1 // pred_check
      _
    $region35: #{tpu_custom_call.1} parent=1 // pred_check_branch
      %60 = sbr.rel (0) target = $region37
    $region36: #{tpu_custom_call.1} parent=1 // pred_region
      %61 = dma.done [#allocation8], 1024
    $region37: #{tpu_custom_call.1} parent=1 // pred_fallthru
      _
    %62 = sfence
    %v63 = vld [vmem:[%s4] sm:$0x7]
    %v64 = vld [vmem:[%s5] sm:$0x1]
    %s65 = sld [smem:[#allocation2]]
    %s66 = sld [smem:[#allocation2 + $0x1]]
    %v67 = vld [vmem:[#allocation6] sm:$0xff]
    %v68 = vlaneseq
    %v69 = vshrl.u32 %v68, 7
    %v70 = vsub.s32 0, %v69
    %v71 = vrot.slane %v63, %v70
    %v72 = vmul.f32 %v67, %v71
    %vm73 = vcmask 80896
    %v74 = vsel %vm73, %v72, 0.0
    %75 = vadd.xlane.f32.xlu0 %v74
    %v76 = vpop.xlane.xlu0 %75
    %v77 = vstv %s65
    %v78 = vadd.f32 %v76, %v77
    %v79 = vxor.u32 %v78, 2147483648
    %v80 = vmul.f32 %v79, 1.442695
    %v81 = vpow.pop %v80
    %v82 = vadd.f32 %v81, 1.0
    %v83 = vrcp.pop %v82
    %v84 = vmul.f32 1.0, %v83
    %v85 = vadd.f32 %v84, 0.0
    %v86 = vmul.f32 %v84, %v67
    %v87 = vadd.f32 %v86, 0.0
    %s88 = scalar_lea.vmem [#allocation6], 8
    %v89 = vld [vmem:[%s88] sm:$0xff]
    %v90 = vmul.f32 %v89, %v71
    %v91 = vsel %vm73, %v90, 0.0
    %92 = vadd.xlane.f32.xlu0 %v91
    %v93 = vpop.xlane.xlu0 %92
    %v94 = vadd.f32 %v93, %v77
    %v95 = vxor.u32 %v94, 2147483648
    %v96 = vmul.f32 %v95, 1.442695
    %v97 = vpow.pop %v96
    %v98 = vadd.f32 %v97, 1.0
    %v99 = vrcp.pop %v98
    %v100 = vmul.f32 1.0, %v99
    %v101 = vadd.f32 %v85, %v100
    %v102 = vmul.f32 %v100, %v89
    %v103 = vadd.f32 %v87, %v102
    %s104 = scalar_lea.vmem [#allocation6], 16
    %v105 = vld [vmem:[%s104] sm:$0xff]
    %v106 = vmul.f32 %v105, %v71
    %v107 = vsel %vm73, %v106, 0.0
    %108 = vadd.xlane.f32.xlu0 %v107
    %v109 = vpop.xlane.xlu0 %108
    %v110 = vadd.f32 %v109, %v77
    %v111 = vxor.u32 %v110, 2147483648
    %v112 = vmul.f32 %v111, 1.442695
    %v113 = vpow.pop %v112
    %v114 = vadd.f32 %v113, 1.0
    %v115 = vrcp.pop %v114
    %v116 = vmul.f32 1.0, %v115
    %v117 = vadd.f32 %v101, %v116
    %v118 = vmul.f32 %v116, %v105
    %v119 = vadd.f32 %v103, %v118
    %s120 = scalar_lea.vmem [#allocation6], 24
    %v121 = vld [vmem:[%s120] sm:$0xff]
    %v122 = vmul.f32 %v121, %v71
    %v123 = vsel %vm73, %v122, 0.0
    %124 = vadd.xlane.f32.xlu0 %v123
    %v125 = vpop.xlane.xlu0 %124
    %v126 = vadd.f32 %v125, %v77
    %v127 = vxor.u32 %v126, 2147483648
    %v128 = vmul.f32 %v127, 1.442695
    %v129 = vpow.pop %v128
    %v130 = vadd.f32 %v129, 1.0
    %v131 = vrcp.pop %v130
    %v132 = vmul.f32 1.0, %v131
    %v133 = vadd.f32 %v117, %v132
    %v134 = vmul.f32 %v132, %v121
    %v135 = vadd.f32 %v119, %v134
    %s136 = scalar_lea.vmem [#allocation6], 32
    %v137 = vld [vmem:[%s136] sm:$0xff]
    %v138 = vmul.f32 %v137, %v71
    %v139 = vsel %vm73, %v138, 0.0
    %140 = vadd.xlane.f32.xlu0 %v139
    %v141 = vpop.xlane.xlu0 %140
    %v142 = vadd.f32 %v141, %v77
    %v143 = vxor.u32 %v142, 2147483648
    %v144 = vmul.f32 %v143, 1.442695
    %v145 = vpow.pop %v144
    %v146 = vadd.f32 %v145, 1.0
    %v147 = vrcp.pop %v146
    %v148 = vmul.f32 1.0, %v147
    %v149 = vadd.f32 %v133, %v148
    %v150 = vmul.f32 %v148, %v137
    %v151 = vadd.f32 %v135, %v150
    %s152 = scalar_lea.vmem [#allocation6], 40
    %v153 = vld [vmem:[%s152] sm:$0xff]
    %v154 = vmul.f32 %v153, %v71
    %v155 = vsel %vm73, %v154, 0.0
    %156 = vadd.xlane.f32.xlu0 %v155
    %v157 = vpop.xlane.xlu0 %156
    %v158 = vadd.f32 %v157, %v77
    %v159 = vxor.u32 %v158, 2147483648
    %v160 = vmul.f32 %v159, 1.442695
    %v161 = vpow.pop %v160
    %v162 = vadd.f32 %v161, 1.0
    %v163 = vrcp.pop %v162
    %v164 = vmul.f32 1.0, %v163
    %v165 = vadd.f32 %v149, %v164
    %v166 = vmul.f32 %v164, %v153
    %v167 = vadd.f32 %v151, %v166
    %s168 = scalar_lea.vmem [#allocation6], 48
    %v169 = vld [vmem:[%s168] sm:$0xff]
    %v170 = vmul.f32 %v169, %v71
    %v171 = vsel %vm73, %v170, 0.0
    %172 = vadd.xlane.f32.xlu0 %v171
    %v173 = vpop.xlane.xlu0 %172
    %v174 = vadd.f32 %v173, %v77
    %v175 = vxor.u32 %v174, 2147483648
    %v176 = vmul.f32 %v175, 1.442695
    %v177 = vpow.pop %v176
    %v178 = vadd.f32 %v177, 1.0
    %v179 = vrcp.pop %v178
    %v180 = vmul.f32 1.0, %v179
    %v181 = vadd.f32 %v165, %v180
    %v182 = vmul.f32 %v180, %v169
    %v183 = vadd.f32 %v167, %v182
    %s184 = scalar_lea.vmem [#allocation6], 56
    %v185 = vld [vmem:[%s184] sm:$0xff]
    %v186 = vmul.f32 %v185, %v71
    %v187 = vsel %vm73, %v186, 0.0
    %188 = vadd.xlane.f32.xlu0 %v187
    %v189 = vpop.xlane.xlu0 %188
    %v190 = vadd.f32 %v189, %v77
    %v191 = vxor.u32 %v190, 2147483648
    %v192 = vmul.f32 %v191, 1.442695
    %v193 = vpow.pop %v192
    %v194 = vadd.f32 %v193, 1.0
    %v195 = vrcp.pop %v194
    %v196 = vmul.f32 1.0, %v195
    %v197 = vadd.f32 %v181, %v196
    %v198 = vmul.f32 %v196, %v185
    %v199 = vadd.f32 %v183, %v198
    %v200 = vrcp.pop %v197
    %v201 = vmul.f32 %v199, %v200
    %v202 = vlaneseq
    %v203 = vshrl.u32 %v202, 7
    %v204 = vsub.s32 1, %v203
    %v205 = vrot.slane %v63, %v204
    %v206 = vmul.f32 %v201, %v205
    %v207 = vlaneseq
    %v208 = vshrl.u32 %v207, 7
    %v209 = vsub.s32 2, %v208
    %v210 = vrot.slane %v63, %v209
    %v211 = vadd.f32 %v206, %v210
    %v212 = vld [vmem:[#allocation7] sm:$0xff]
    %v214 = vlaneseq
    %v215 = vshrl.u32 %v214, 7
    %v216 = vsub.s32 0, %v215
    %v217 = vrot.slane %v64, %v216
    %v219 = vmul.f32 %v212, %v217
    %vm220 = vcmask 261120
    %v221 = vsel %vm220, %v219, 0.0
    %222 = vadd.xlane.f32.xlu0 %v221
    %v223 = vpop.xlane.xlu0 %222
    %v224 = vadd.f32 %v223, 0.0
    %s225 = scalar_lea.vmem [#allocation7], 8
    %v226 = vld [vmem:[%s225] sm:$0xff]
    %v227 = vmul.f32 %v226, %v217
    %v228 = vsel %vm220, %v227, 0.0
    %229 = vadd.xlane.f32.xlu0 %v228
    %v230 = vpop.xlane.xlu0 %229
    %v231 = vadd.f32 %v224, %v230
    %s232 = scalar_lea.vmem [#allocation7], 16
    %v233 = vld [vmem:[%s232] sm:$0xff]
    %v234 = vmul.f32 %v233, %v217
    %v235 = vsel %vm220, %v234, 0.0
    %236 = vadd.xlane.f32.xlu0 %v235
    %v237 = vpop.xlane.xlu0 %236
    %v238 = vadd.f32 %v231, %v237
    %s239 = scalar_lea.vmem [#allocation7], 24
    %v240 = vld [vmem:[%s239] sm:$0xff]
    %v241 = vmul.f32 %v240, %v217
    %v242 = vsel %vm220, %v241, 0.0
    %243 = vadd.xlane.f32.xlu0 %v242
    %v244 = vpop.xlane.xlu0 %243
    %v245 = vadd.f32 %v238, %v244
    %s246 = scalar_lea.vmem [#allocation7], 32
    %v247 = vld [vmem:[%s246] sm:$0xff]
    %v248 = vmul.f32 %v247, %v217
    %v249 = vsel %vm220, %v248, 0.0
    %250 = vadd.xlane.f32.xlu0 %v249
    %v251 = vpop.xlane.xlu0 %250
    %v252 = vadd.f32 %v245, %v251
    %s253 = scalar_lea.vmem [#allocation7], 40
    %v254 = vld [vmem:[%s253] sm:$0xff]
    %v255 = vmul.f32 %v254, %v217
    %v256 = vsel %vm220, %v255, 0.0
    %257 = vadd.xlane.f32.xlu0 %v256
    %v258 = vpop.xlane.xlu0 %257
    %v259 = vadd.f32 %v252, %v258
    %s260 = scalar_lea.vmem [#allocation7], 48
    %v261 = vld [vmem:[%s260] sm:$0xff]
    %v262 = vmul.f32 %v261, %v217
    %v263 = vsel %vm220, %v262, 0.0
    %264 = vadd.xlane.f32.xlu0 %v263
    %v265 = vpop.xlane.xlu0 %264
    %v266 = vadd.f32 %v259, %v265
    %s267 = scalar_lea.vmem [#allocation7], 56
    %v268 = vld [vmem:[%s267] sm:$0xff]
    %v269 = vmul.f32 %v268, %v217
    %v270 = vsel %vm220, %v269, 0.0
    %271 = vadd.xlane.f32.xlu0 %v270
    %v272 = vpop.xlane.xlu0 %271
    %v273 = vadd.f32 %v266, %v272
    %v274 = vmul.f32 %v273, 0.125
    %v275 = vstv %s66
    %v276 = vadd.f32 %v274, %v275
    %v277 = vxor.u32 %v276, 2147483648
    %v278 = vmul.f32 %v277, 1.442695
    %v279 = vpow.pop %v278
    %v280 = vadd.f32 %v279, 1.0
    %v281 = vrcp.pop %v280
    %v282 = vmul.f32 1.0, %v281
    %v283 = vld [vmem:[%s3] sm:$0xff]
    %v284 = vmul.f32 %v282, %v211
    %v285 = vsub.f32 1.0, %v282
    %v286 = vmul.f32 %v285, %v283
    %v287 = vadd.f32 %v284, %v286
    %288 = vst.msk [vmem:[#allocation9] sm:$0xff] %vm73, %v287
    // Predicated region
    $region38: #{tpu_custom_call.1} parent=1 // pred_check
      _
    $region39: #{tpu_custom_call.1} parent=1 // pred_check_branch
      %290 = sbr.rel (0) target = $region41
    $region40: #{tpu_custom_call.1} parent=1 // pred_region
      %s292 = ssub.s32 128, 128
      %293 = vsyncadd [#allocation4], %s292
      %s295 = sshll.u32 [#allocation9], 4
      %s296 = int_to_ptr.vmem [resolvable:$true] %s295
      %298 = dma.vmem_to_hbm [thread:$0]  %s296, 128, %s6, [#allocation4]
    $region41: #{tpu_custom_call.1} parent=1 // pred_fallthru
      _
    // Predicated region
    $region42: #{tpu_custom_call.1} parent=1 // pred_check
      _
    $region43: #{tpu_custom_call.1} parent=1 // pred_check_branch
      %300 = sbr.rel (0) target = $region45
    $region44: #{tpu_custom_call.1} parent=1 // pred_region
      %301 = dma.done [#allocation4], 128
    $region45: #{tpu_custom_call.1} parent=1 // pred_fallthru
      _
    %302 = vsyncpa [#allocation3], 1
    %303 = vsyncpa [#allocation8], 1
    %304 = vsyncpa [#allocation4], 1
    %305 = vsyncpa [#allocation5], 1

</llo_original>
